<compile_context>
chip_gen: v5e
topology: v5e:2x2
jax: 0.10.0
libtpu: 0.0.40
codegen_flags: <defaults>
</compile_context>

<pallas_src>
import jax
import jax.numpy as jnp
from jax import lax
from jax.experimental import pallas as pl
from jax.experimental.pallas import tpu as pltpu

IN_DIM = 512    # CLIP text feature dim
HID_DIM = 128

# TODO(synk): the full CLIP_text forward (token_embedding lookup, 12-layer
# transformer, ln_final, EOT-token gather @ text_projection) requires the
# pretrained CLIP weights and is not reproduced here; this kernel keeps the
# 512->128->512 projection-MLP stand-in from the previous version.


def _round_up(n: int, m: int) -> int:
    return (n + m - 1) // m * m


def mlp_kernel(x_ref, w1_ref, b1_ref, w2_ref, b2_ref, o_ref):
    # x_ref: (TB, 512) bf16       w1_ref: (128, 512) bf16   b1_ref: (1, 128) f32
    # w2_ref: (512, 128) bf16     b2_ref: (1, 512) f32      o_ref: (TB, 512) f32
    x = x_ref[...]

    # x @ W1^T on the MXU: contract the shared 512-dim of both operands
    # (PyTorch (out, in) layout kept -> Mosaic handles the transposed RHS).
    h = lax.dot_general(
        x, w1_ref[...],
        dimension_numbers=(((1,), (1,)), ((), ())),
        preferred_element_type=jnp.float32,
    )
    # Bias + ReLU in f32 on the VPU (v5e has no bf16 VALU; f32 is free here).
    h = jnp.maximum(h + b1_ref[...], 0.0)

    # Second layer: downcast the activations to bf16 only at the MXU boundary.
    out = lax.dot_general(
        h.astype(jnp.bfloat16), w2_ref[...],
        dimension_numbers=(((1,), (1,)), ((), ())),
        preferred_element_type=jnp.float32,
    )
    o_ref[...] = (out + b2_ref[...]).astype(o_ref.dtype)


def mlp_forward(x, w1, b1, w2, b2, *, tb=256):
    """x: (B, 512).  w1: (128, 512), b1: (128,), w2: (512, 128), b2: (512,)
    (PyTorch nn.Linear layout).  Returns (B, 512) float32."""
    B = x.shape[0]

    # Batch tile: default 256 (matches the 256-tall v6e/v7x MXU; two full
    # 128-row passes on v5e).  Clamp to the 128-rounded batch so tiny batches
    # don't pad all the way to 256, and keep it a multiple of 128 (full MXU
    # height; also a multiple of the 16-row bf16 sublane packing).
    tb = _round_up(max(128, min(tb, _round_up(B, 128))), 128)
    Bp = _round_up(B, tb)
    if Bp != B:
        x = jnp.pad(x, ((0, Bp - B), (0, 0)))

    # bf16 inputs to the MXU (halves the dominant HBM traffic); biases and all
    # accumulation stay f32.
    x_bf = x.astype(jnp.bfloat16)
    w1_bf = w1.astype(jnp.bfloat16)          # (128, 512), (out, in) kept
    w2_bf = w2.astype(jnp.bfloat16)          # (512, 128), (out, in) kept
    b1r = b1.reshape(1, HID_DIM).astype(jnp.float32)
    b2r = b2.reshape(1, IN_DIM).astype(jnp.float32)

    grid = (Bp // tb,)

    cost = pl.CostEstimate(
        flops=2 * 2 * Bp * IN_DIM * HID_DIM,          # two dense layers
        transcendentals=0,
        bytes_accessed=(Bp * IN_DIM * 2               # x in (bf16)
                        + Bp * IN_DIM * 4             # out (f32)
                        + 2 * HID_DIM * IN_DIM * 2    # W1 + W2 (bf16)
                        + (HID_DIM + IN_DIM) * 4),    # biases (f32)
    )

    out = pl.pallas_call(
        mlp_kernel,
        out_shape=jax.ShapeDtypeStruct((Bp, IN_DIM), jnp.float32),
        grid_spec=pltpu.PrefetchScalarGridSpec(
            num_scalar_prefetch=0,
            grid=grid,
            in_specs=[
                # Streaming x tile: (tb, 512) is sublane/lane-dense.
                pl.BlockSpec((tb, IN_DIM), lambda i: (i, 0)),
                # Grid-invariant weights/biases: constant block index =>
                # fetched once and kept resident across all grid steps.
                pl.BlockSpec((HID_DIM, IN_DIM), lambda i: (0, 0)),   # W1 (out, in)
                pl.BlockSpec((1, HID_DIM), lambda i: (0, 0)),        # b1
                pl.BlockSpec((IN_DIM, HID_DIM), lambda i: (0, 0)),   # W2 (out, in)
                pl.BlockSpec((1, IN_DIM), lambda i: (0, 0)),         # b2
            ],
            # Output stays full-width 512 (4 x 128 lanes): unmasked vst stores.
            out_specs=pl.BlockSpec((tb, IN_DIM), lambda i: (i, 0)),
        ),
        compiler_params=pltpu.CompilerParams(
            # Batch axis is embarrassingly parallel -> megacore sharding on
            # v7x when Bp // tb >= 2.
            dimension_semantics=("parallel",),
        ),
        cost_estimate=cost,
    )(x_bf, w1_bf, b1r, w2_bf, b2r)

    return out[:B]


def mlp_reference(x, w1, b1, w2, b2):
    h = jnp.maximum(x @ w1.T + b1, 0.0)
    return h @ w2.T + b2


if __name__ == "__main__":
    key = jax.random.PRNGKey(0)
    kx, k1, k2, k3, k4 = jax.random.split(key, 5)

    # 7 prompts (the module's emotion prompt set) x 512-dim CLIP text features.
    B = 7
    x = jax.random.normal(kx, (B, IN_DIM), dtype=jnp.float32)

    # PyTorch nn.Linear layouts: weight (out, in), bias (out,).
    w1 = jax.random.uniform(k1, (HID_DIM, IN_DIM), jnp.float32,
                            minval=-1.0, maxval=1.0) / jnp.sqrt(IN_DIM)
    b1 = jax.random.uniform(k2, (HID_DIM,), jnp.float32,
                            minval=-1.0, maxval=1.0) / jnp.sqrt(IN_DIM)
    w2 = jax.random.uniform(k3, (IN_DIM, HID_DIM), jnp.float32,
                            minval=-1.0, maxval=1.0) / jnp.sqrt(HID_DIM)
    b2 = jax.random.uniform(k4, (IN_DIM,), jnp.float32,
                            minval=-1.0, maxval=1.0) / jnp.sqrt(HID_DIM)

    feature_t = mlp_forward(x, w1, b1, w2, b2)
    feature_t = jax.block_until_ready(feature_t)

    # Module also returns logit_scale.exp(); scalar, computed outside the
    # kernel (CLIP init value: log(1 / 0.07)).
    logit_scale = jnp.exp(jnp.asarray(jnp.log(1.0 / 0.07), jnp.float32))
    logit_scale = jax.block_until_ready(logit_scale)

    ref = mlp_reference(x, w1, b1, w2, b2)
    assert feature_t.shape == (B, IN_DIM)
    # bf16 MXU inputs with f32 accumulation -> relaxed tolerance vs the f32 ref.
    assert jnp.allclose(feature_t, ref, atol=2e-2, rtol=2e-2), (
        float(jnp.max(jnp.abs(feature_t - ref))))
    assert bool(jnp.isfinite(logit_scale))

    print("KERNEL_OK")
</pallas_src>

<mosaic_0001>
module attributes {stable_mosaic.version = 11 : i64} {
  func.func @mlp_kernel(%arg0: i32, %arg1: memref<128x512xbf16, #tpu.memory_space<vmem>>, %arg2: memref<128x512xbf16, #tpu.memory_space<vmem>>, %arg3: memref<1x128xf32, #tpu.memory_space<vmem>>, %arg4: memref<512x128xbf16, #tpu.memory_space<vmem>>, %arg5: memref<1x512xf32, #tpu.memory_space<vmem>>, %arg6: memref<128x512xf32, #tpu.memory_space<vmem>>) attributes {dimension_semantics = [#tpu.dimension_semantics<parallel>], iteration_bounds = array<i64: 1>, scalar_prefetch = 0 : i64, scratch_operands = 0 : i64, tpu.core_type = #tpu.core_type<tc>, window_params = [{transform_indices = @transform_0, window_bounds = array<i64: 128, 512>}, {pipeline_mode = #tpu.pipeline_mode<synchronous>, transform_indices = @transform_1, window_bounds = array<i64: 128, 512>}, {pipeline_mode = #tpu.pipeline_mode<synchronous>, transform_indices = @transform_2, window_bounds = array<i64: 1, 128>}, {pipeline_mode = #tpu.pipeline_mode<synchronous>, transform_indices = @transform_3, window_bounds = array<i64: 512, 128>}, {pipeline_mode = #tpu.pipeline_mode<synchronous>, transform_indices = @transform_4, window_bounds = array<i64: 1, 512>}, {transform_indices = @transform_5, window_bounds = array<i64: 128, 512>}]} {
    %c0 = arith.constant 0 : index
    %c0_0 = arith.constant 0 : index
    %0 = vector.load %arg1[%c0, %c0_0] : memref<128x512xbf16, #tpu.memory_space<vmem>>, vector<128x512xbf16>
    %c0_1 = arith.constant 0 : index
    %c0_2 = arith.constant 0 : index
    %1 = vector.load %arg2[%c0_1, %c0_2] : memref<128x512xbf16, #tpu.memory_space<vmem>>, vector<128x512xbf16>
    %cst = arith.constant dense<0.000000e+00> : vector<128x128xf32>
    %2 = tpu.matmul %0, %1, %cst {dimension_numbers = #tpu.dot_dimension_numbers<[1], [1], [0], [0], [0, 0, 1, 0], [], []>} : vector<128x512xbf16>, vector<128x512xbf16>, vector<128x128xf32> -> vector<128x128xf32>
    %c0_3 = arith.constant 0 : index
    %c0_4 = arith.constant 0 : index
    %3 = vector.load %arg3[%c0_3, %c0_4] : memref<1x128xf32, #tpu.memory_space<vmem>>, vector<1x128xf32>
    %4 = vector.broadcast %3 : vector<1x128xf32> to vector<128x128xf32>
    %5 = arith.addf %2, %4 : vector<128x128xf32>
    %cst_5 = arith.constant 0.000000e+00 : f32
    %6 = vector.broadcast %cst_5 : f32 to vector<128x128xf32>
    %7 = arith.maximumf %5, %6 : vector<128x128xf32>
    %8 = arith.truncf %7 : vector<128x128xf32> to vector<128x128xbf16>
    %c0_6 = arith.constant 0 : index
    %c0_7 = arith.constant 0 : index
    %9 = vector.load %arg4[%c0_6, %c0_7] : memref<512x128xbf16, #tpu.memory_space<vmem>>, vector<512x128xbf16>
    %cst_8 = arith.constant dense<0.000000e+00> : vector<128x512xf32>
    %10 = tpu.matmul %8, %9, %cst_8 {dimension_numbers = #tpu.dot_dimension_numbers<[1], [1], [0], [0], [0, 0, 1, 0], [], []>} : vector<128x128xbf16>, vector<512x128xbf16>, vector<128x512xf32> -> vector<128x512xf32>
    %c0_9 = arith.constant 0 : index
    %c0_10 = arith.constant 0 : index
    %11 = vector.load %arg5[%c0_9, %c0_10] : memref<1x512xf32, #tpu.memory_space<vmem>>, vector<1x512xf32>
    %12 = vector.broadcast %11 : vector<1x512xf32> to vector<128x512xf32>
    %13 = arith.addf %10, %12 : vector<128x512xf32>
    %c0_11 = arith.constant 0 : index
    %c0_12 = arith.constant 0 : index
    %14 = vector.load %arg6[%c0_11, %c0_12] : memref<128x512xf32, #tpu.memory_space<vmem>>, vector<128x512xf32>
    tpu.vector_store %arg6[%c0_11, %c0_12], %13 {strides = array<i32>} : memref<128x512xf32, #tpu.memory_space<vmem>>, vector<128x512xf32>,
    return
  }
  func.func @transform_0(%arg0: i32) -> (i32, i32) {
    %c0_i32 = arith.constant 0 : i32
    %c0_i32_0 = arith.constant 0 : i32
    return %arg0, %c0_i32 : i32, i32
  }
  func.func @transform_1(%arg0: i32) -> (i32, i32) {
    %c0_i32 = arith.constant 0 : i32
    %c0_i32_0 = arith.constant 0 : i32
    %c0_i32_1 = arith.constant 0 : i32
    return %c0_i32, %c0_i32_0 : i32, i32
  }
  func.func @transform_2(%arg0: i32) -> (i32, i32) {
    %c0_i32 = arith.constant 0 : i32
    %c0_i32_0 = arith.constant 0 : i32
    %c0_i32_1 = arith.constant 0 : i32
    return %c0_i32, %c0_i32_0 : i32, i32
  }
  func.func @transform_3(%arg0: i32) -> (i32, i32) {
    %c0_i32 = arith.constant 0 : i32
    %c0_i32_0 = arith.constant 0 : i32
    %c0_i32_1 = arith.constant 0 : i32
    return %c0_i32, %c0_i32_0 : i32, i32
  }
  func.func @transform_4(%arg0: i32) -> (i32, i32) {
    %c0_i32 = arith.constant 0 : i32
    %c0_i32_0 = arith.constant 0 : i32
    %c0_i32_1 = arith.constant 0 : i32
    return %c0_i32, %c0_i32_0 : i32, i32
  }
  func.func @transform_5(%arg0: i32) -> (i32, i32) {
    %c0_i32 = arith.constant 0 : i32
    %c0_i32_0 = arith.constant 0 : i32
    return %arg0, %c0_i32 : i32, i32
  }
}

</mosaic_0001>

<llo_original>
// kernel: tpu_custom_call.1
$region0: #{tpu_custom_call.1}
  #allocation0 [shape = 'u32[]', space=smem, size = 0x4, offset = 0x4, fixed_abs, tag = 'smem constant byte address 0x4 - core index']
  #allocation1 [shape = 'u32[72,128]{1,0:T(1,128)}', space=vmem, size = 0x9000, scoped, tag = 'internal scratch']
  %s0 = inlined_call_operand.hbm [shape: bf16[128,512], index: 0, kind: input, shape index: {}]
  %s1 = inlined_call_operand.hbm [shape: bf16[128,512], index: 1, kind: input, shape index: {}]
  %s2 = inlined_call_operand.vmem [shape: f32[1,128], index: 2, kind: input, shape index: {}]
  %s3 = inlined_call_operand.hbm [shape: bf16[512,128], index: 3, kind: input, shape index: {}]
  %s4 = inlined_call_operand.hbm [shape: f32[1,512], index: 4, kind: input, shape index: {}]
  %s5 = inlined_call_operand.hbm [shape: f32[128,512], index: 5, kind: output, shape index: {}]
  %s6 = sld [smem:[#allocation0]]
  $region46: #{tpu_custom_call.1} parent=0
    _
  %s8 = ssub.s32 1, %s6
  %s9 = scalar_select 0, %s8, %s6
  $region1: #{tpu_custom_call.1} parent=0
    #allocation2 [shape = 'u8[131072]{0}', space=vmem, size = 0x20000, scoped, tag = 'input window, operand 0, single buffered']
    #allocation3 [shape = 's32[1]{0}', space=sflag, size = 0x4, scoped, tag = 'scoped memory for tpu_custom_call.1']
    #allocation4 [shape = 's32[1]{0}', space=sflag, size = 0x4, scoped, tag = 'scoped memory for tpu_custom_call.1']
    #allocation5 [shape = 'u8[131072]{0}', space=vmem, size = 0x20000, scoped, tag = 'input window, operand 1, single buffered']
    #allocation6 [shape = 's32[1]{0}', space=sflag, size = 0x4, scoped, tag = 'scoped memory for tpu_custom_call.1']
    #allocation7 [shape = 'u8[131072]{0}', space=vmem, size = 0x20000, scoped, tag = 'input window, operand 3, single buffered']
    #allocation8 [shape = 'u8[2048]{0}', space=vmem, size = 0x800, scoped, tag = 'input window, operand 4, single buffered']
    #allocation9 [shape = 's32[1]{0}', space=sflag, size = 0x4, scoped, tag = 'scoped memory for tpu_custom_call.1']
    #allocation10 [shape = 'u8[262144]{0}', space=vmem, size = 0x40000, scoped, tag = 'output window, operand 0, single buffered']
    %10 = vsyncpa [#allocation3], 0
    %11 = vsyncpa [#allocation6], 0
    %12 = vsyncpa [#allocation9], 0
    %13 = vsyncpa [#allocation4], 0
    // Predicated region
    $region2: #{tpu_custom_call.1} parent=1 // pred_check
      _
    $region3: #{tpu_custom_call.1} parent=1 // pred_check_branch
      %15 = sbr.rel (0) target = $region5
    $region4: #{tpu_custom_call.1} parent=1 // pred_region
      %17 = vsyncadd [#allocation3], 0
      %s18 = sshll.u32 %s0, 4
      %s19 = int_to_ptr.hbm [resolvable:$true] %s18
      %s20 = sshll.u32 [#allocation2], 4
      %s21 = int_to_ptr.vmem [resolvable:$true] %s20
      %26 = dma.hbm_to_vmem [thread:$0]  %s19, 4096, %s21, [#allocation3], 256, 256, 16
    $region5: #{tpu_custom_call.1} parent=1 // pred_fallthru
      _
    // Predicated region
    $region6: #{tpu_custom_call.1} parent=1 // pred_check
      _
    $region7: #{tpu_custom_call.1} parent=1 // pred_check_branch
      %28 = sbr.rel (0) target = $region9
    $region8: #{tpu_custom_call.1} parent=1 // pred_region
      %30 = vsyncadd [#allocation6], 0
      %s31 = sshll.u32 %s1, 4
      %s32 = int_to_ptr.hbm [resolvable:$true] %s31
      %s33 = sshll.u32 [#allocation5], 4
      %s34 = int_to_ptr.vmem [resolvable:$true] %s33
      %39 = dma.hbm_to_vmem [thread:$0]  %s32, 4096, %s34, [#allocation6], 256, 256, 16
    $region9: #{tpu_custom_call.1} parent=1 // pred_fallthru
      _
    // Predicated region
    $region10: #{tpu_custom_call.1} parent=1 // pred_check
      _
    $region11: #{tpu_custom_call.1} parent=1 // pred_check_branch
      %41 = sbr.rel (0) target = $region13
    $region12: #{tpu_custom_call.1} parent=1 // pred_region
      _
    $region13: #{tpu_custom_call.1} parent=1 // pred_fallthru
      _
    // Predicated region
    $region14: #{tpu_custom_call.1} parent=1 // pred_check
      _
    $region15: #{tpu_custom_call.1} parent=1 // pred_check_branch
      %43 = sbr.rel (0) target = $region17
    $region16: #{tpu_custom_call.1} parent=1 // pred_region
      %45 = vsyncadd [#allocation6], 0
      %s46 = sshll.u32 %s3, 4
      %s47 = int_to_ptr.hbm [resolvable:$true] %s46
      %s48 = sshll.u32 [#allocation7], 4
      %s49 = int_to_ptr.vmem [resolvable:$true] %s48
      %54 = dma.hbm_to_vmem [thread:$0]  %s47, 4096, %s49, [#allocation6], 64, 64, 4
    $region17: #{tpu_custom_call.1} parent=1 // pred_fallthru
      _
    // Predicated region
    $region18: #{tpu_custom_call.1} parent=1 // pred_check
      _
    $region19: #{tpu_custom_call.1} parent=1 // pred_check_branch
      %56 = sbr.rel (0) target = $region21
    $region20: #{tpu_custom_call.1} parent=1 // pred_region
      %58 = vsyncadd [#allocation9], 0
      %s60 = sshll.u32 %s4, 4
      %s61 = int_to_ptr.hbm [resolvable:$true] %s60
      %s62 = sshll.u32 [#allocation8], 4
      %s63 = int_to_ptr.vmem [resolvable:$true] %s62
      %65 = dma.hbm_to_vmem [thread:$0]  %s61, 64, %s63, [#allocation9]
    $region21: #{tpu_custom_call.1} parent=1 // pred_fallthru
      _
    // Predicated region
    $region22: #{tpu_custom_call.1} parent=1 // pred_check
      _
    $region23: #{tpu_custom_call.1} parent=1 // pred_check_branch
      %67 = sbr.rel (0) target = $region25
    $region24: #{tpu_custom_call.1} parent=1 // pred_region
      %69 = dma.done [#allocation3], 4096
    $region25: #{tpu_custom_call.1} parent=1 // pred_fallthru
      _
    // Predicated region
    $region26: #{tpu_custom_call.1} parent=1 // pred_check
      _
    $region27: #{tpu_custom_call.1} parent=1 // pred_check_branch
      %71 = sbr.rel (0) target = $region29
    $region28: #{tpu_custom_call.1} parent=1 // pred_region
      %73 = dma.done [#allocation6], 4096
    $region29: #{tpu_custom_call.1} parent=1 // pred_fallthru
      _
    // Predicated region
    $region30: #{tpu_custom_call.1} parent=1 // pred_check
      _
    $region31: #{tpu_custom_call.1} parent=1 // pred_check_branch
      %75 = sbr.rel (0) target = $region33
    $region32: #{tpu_custom_call.1} parent=1 // pred_region
      %77 = dma.done [#allocation6], 4096
    $region33: #{tpu_custom_call.1} parent=1 // pred_fallthru
      _
    // Predicated region
    $region34: #{tpu_custom_call.1} parent=1 // pred_check
      _
    $region35: #{tpu_custom_call.1} parent=1 // pred_check_branch
      %79 = sbr.rel (0) target = $region37
    $region36: #{tpu_custom_call.1} parent=1 // pred_region
      %81 = dma.done [#allocation9], 64
    $region37: #{tpu_custom_call.1} parent=1 // pred_fallthru
      _
    %v82 = vld [vmem:[#allocation2] sm:$0xff]
    %v83 = vld [vmem:[#allocation2 + $0x8] sm:$0xff]
    %v84 = vld [vmem:[#allocation2 + $0x10] sm:$0xff]
    %v85 = vld [vmem:[#allocation2 + $0x18] sm:$0xff]
    %v86 = vld [vmem:[#allocation2 + $0x20] sm:$0xff]
    %v87 = vld [vmem:[#allocation2 + $0x28] sm:$0xff]
    %v88 = vld [vmem:[#allocation2 + $0x30] sm:$0xff]
    %v89 = vld [vmem:[#allocation2 + $0x38] sm:$0xff]
    %v90 = vld [vmem:[#allocation2 + $0x40] sm:$0xff]
    %v91 = vld [vmem:[#allocation2 + $0x48] sm:$0xff]
    %v92 = vld [vmem:[#allocation2 + $0x50] sm:$0xff]
    %v93 = vld [vmem:[#allocation2 + $0x58] sm:$0xff]
    %v94 = vld [vmem:[#allocation2 + $0x60] sm:$0xff]
    %v95 = vld [vmem:[#allocation2 + $0x68] sm:$0xff]
    %v96 = vld [vmem:[#allocation2 + $0x70] sm:$0xff]
    %v97 = vld [vmem:[#allocation2 + $0x78] sm:$0xff]
    %v98 = vld [vmem:[#allocation2 + $0x80] sm:$0xff]
    %v99 = vld [vmem:[#allocation2 + $0x88] sm:$0xff]
    %v100 = vld [vmem:[#allocation2 + $0x90] sm:$0xff]
    %v101 = vld [vmem:[#allocation2 + $0x98] sm:$0xff]
    %v102 = vld [vmem:[#allocation2 + $0xa0] sm:$0xff]
    %v103 = vld [vmem:[#allocation2 + $0xa8] sm:$0xff]
    %v104 = vld [vmem:[#allocation2 + $0xb0] sm:$0xff]
    %v105 = vld [vmem:[#allocation2 + $0xb8] sm:$0xff]
    %v106 = vld [vmem:[#allocation2 + $0xc0] sm:$0xff]
    %v107 = vld [vmem:[#allocation2 + $0xc8] sm:$0xff]
    %v108 = vld [vmem:[#allocation2 + $0xd0] sm:$0xff]
    %v109 = vld [vmem:[#allocation2 + $0xd8] sm:$0xff]
    %v110 = vld [vmem:[#allocation2 + $0xe0] sm:$0xff]
    %v111 = vld [vmem:[#allocation2 + $0xe8] sm:$0xff]
    %v112 = vld [vmem:[#allocation2 + $0xf0] sm:$0xff]
    %v113 = vld [vmem:[#allocation2 + $0xf8] sm:$0xff]
    %v114 = vld [vmem:[#allocation5] sm:$0xff]
    %v115 = vld [vmem:[#allocation5 + $0x8] sm:$0xff]
    %v116 = vld [vmem:[#allocation5 + $0x10] sm:$0xff]
    %v117 = vld [vmem:[#allocation5 + $0x18] sm:$0xff]
    %v118 = vld [vmem:[#allocation5 + $0x20] sm:$0xff]
    %v119 = vld [vmem:[#allocation5 + $0x28] sm:$0xff]
    %v120 = vld [vmem:[#allocation5 + $0x30] sm:$0xff]
    %v121 = vld [vmem:[#allocation5 + $0x38] sm:$0xff]
    %v122 = vld [vmem:[#allocation5 + $0x40] sm:$0xff]
    %v123 = vld [vmem:[#allocation5 + $0x48] sm:$0xff]
    %v124 = vld [vmem:[#allocation5 + $0x50] sm:$0xff]
    %v125 = vld [vmem:[#allocation5 + $0x58] sm:$0xff]
    %v126 = vld [vmem:[#allocation5 + $0x60] sm:$0xff]
    %v127 = vld [vmem:[#allocation5 + $0x68] sm:$0xff]
    %v128 = vld [vmem:[#allocation5 + $0x70] sm:$0xff]
    %v129 = vld [vmem:[#allocation5 + $0x78] sm:$0xff]
    %v130 = vld [vmem:[#allocation5 + $0x80] sm:$0xff]
    %v131 = vld [vmem:[#allocation5 + $0x88] sm:$0xff]
    %v132 = vld [vmem:[#allocation5 + $0x90] sm:$0xff]
    %v133 = vld [vmem:[#allocation5 + $0x98] sm:$0xff]
    %v134 = vld [vmem:[#allocation5 + $0xa0] sm:$0xff]
    %v135 = vld [vmem:[#allocation5 + $0xa8] sm:$0xff]
    %v136 = vld [vmem:[#allocation5 + $0xb0] sm:$0xff]
    %v137 = vld [vmem:[#allocation5 + $0xb8] sm:$0xff]
    %v138 = vld [vmem:[#allocation5 + $0xc0] sm:$0xff]
    %v139 = vld [vmem:[#allocation5 + $0xc8] sm:$0xff]
    %v140 = vld [vmem:[#allocation5 + $0xd0] sm:$0xff]
    %v141 = vld [vmem:[#allocation5 + $0xd8] sm:$0xff]
    %v142 = vld [vmem:[#allocation5 + $0xe0] sm:$0xff]
    %v143 = vld [vmem:[#allocation5 + $0xe8] sm:$0xff]
    %v144 = vld [vmem:[#allocation5 + $0xf0] sm:$0xff]
    %v145 = vld [vmem:[#allocation5 + $0xf8] sm:$0xff]
    %v146 = vld [vmem:[%s2] sm:$0x1]
    %v148 = vperm.slane %v146, 0
    %v182 = vunpack.c.l.b16 %v82
    %v183 = vunpack.c.h.b16 %v82
    %v184 = vunpack.c.l.b16 %v83
    %v185 = vunpack.c.h.b16 %v83
    %v186 = vunpack.c.l.b16 %v84
    %v187 = vunpack.c.h.b16 %v84
    %v188 = vunpack.c.l.b16 %v85
    %v189 = vunpack.c.h.b16 %v85
    %v190 = vunpack.c.l.b16 %v86
    %v191 = vunpack.c.h.b16 %v86
    %v192 = vunpack.c.l.b16 %v87
    %v193 = vunpack.c.h.b16 %v87
    %v194 = vunpack.c.l.b16 %v88
    %v195 = vunpack.c.h.b16 %v88
    %v196 = vunpack.c.l.b16 %v89
    %v197 = vunpack.c.h.b16 %v89
    %v198 = vunpack.c.l.b16 %v90
    %v199 = vunpack.c.h.b16 %v90
    %v200 = vunpack.c.l.b16 %v91
    %v201 = vunpack.c.h.b16 %v91
    %v202 = vunpack.c.l.b16 %v92
    %v203 = vunpack.c.h.b16 %v92
    %v204 = vunpack.c.l.b16 %v93
    %v205 = vunpack.c.h.b16 %v93
    %v206 = vunpack.c.l.b16 %v94
    %v207 = vunpack.c.h.b16 %v94
    %v208 = vunpack.c.l.b16 %v95
    %v209 = vunpack.c.h.b16 %v95
    %v210 = vunpack.c.l.b16 %v96
    %v211 = vunpack.c.h.b16 %v96
    %v212 = vunpack.c.l.b16 %v97
    %v213 = vunpack.c.h.b16 %v97
    %v214 = vunpack.c.l.b16 %v98
    %v215 = vunpack.c.h.b16 %v98
    %v216 = vunpack.c.l.b16 %v99
    %v217 = vunpack.c.h.b16 %v99
    %v218 = vunpack.c.l.b16 %v100
    %v219 = vunpack.c.h.b16 %v100
    %v220 = vunpack.c.l.b16 %v101
    %v221 = vunpack.c.h.b16 %v101
    %v222 = vunpack.c.l.b16 %v102
    %v223 = vunpack.c.h.b16 %v102
    %v224 = vunpack.c.l.b16 %v103
    %v225 = vunpack.c.h.b16 %v103
    %v226 = vunpack.c.l.b16 %v104
    %v227 = vunpack.c.h.b16 %v104
    %v228 = vunpack.c.l.b16 %v105
    %v229 = vunpack.c.h.b16 %v105
    %v230 = vunpack.c.l.b16 %v106
    %v231 = vunpack.c.h.b16 %v106
    %v232 = vunpack.c.l.b16 %v107
    %v233 = vunpack.c.h.b16 %v107
    %v234 = vunpack.c.l.b16 %v108
    %v235 = vunpack.c.h.b16 %v108
    %v236 = vunpack.c.l.b16 %v109
    %v237 = vunpack.c.h.b16 %v109
    %v238 = vunpack.c.l.b16 %v110
    %v239 = vunpack.c.h.b16 %v110
    %v240 = vunpack.c.l.b16 %v111
    %v241 = vunpack.c.h.b16 %v111
    %v242 = vunpack.c.l.b16 %v112
    %v243 = vunpack.c.h.b16 %v112
    %v244 = vunpack.c.l.b16 %v113
    %v245 = vunpack.c.h.b16 %v113
    %v246 = vpack.c.b16 %v186, %v182
    %v247 = vpack.c.b16 %v187, %v183
    %v248 = vpack.c.b16 %v188, %v184
    %v249 = vpack.c.b16 %v189, %v185
    %v250 = vpack.c.b16 %v194, %v190
    %v251 = vpack.c.b16 %v195, %v191
    %v252 = vpack.c.b16 %v196, %v192
    %v253 = vpack.c.b16 %v197, %v193
    %v254 = vpack.c.b16 %v202, %v198
    %v255 = vpack.c.b16 %v203, %v199
    %v256 = vpack.c.b16 %v204, %v200
    %v257 = vpack.c.b16 %v205, %v201
    %v258 = vpack.c.b16 %v210, %v206
    %v259 = vpack.c.b16 %v211, %v207
    %v260 = vpack.c.b16 %v212, %v208
    %v261 = vpack.c.b16 %v213, %v209
    %v262 = vpack.c.b16 %v218, %v214
    %v263 = vpack.c.b16 %v219, %v215
    %v264 = vpack.c.b16 %v220, %v216
    %v265 = vpack.c.b16 %v221, %v217
    %v266 = vpack.c.b16 %v226, %v222
    %v267 = vpack.c.b16 %v227, %v223
    %v268 = vpack.c.b16 %v228, %v224
    %v269 = vpack.c.b16 %v229, %v225
    %v270 = vpack.c.b16 %v234, %v230
    %v271 = vpack.c.b16 %v235, %v231
    %v272 = vpack.c.b16 %v236, %v232
    %v273 = vpack.c.b16 %v237, %v233
    %v274 = vpack.c.b16 %v242, %v238
    %v275 = vpack.c.b16 %v243, %v239
    %v276 = vpack.c.b16 %v244, %v240
    %v277 = vpack.c.b16 %v245, %v241
    %v342 = vunpack.c.l.b16 %v114
    %v343 = vunpack.c.h.b16 %v114
    %v344 = vunpack.c.l.b16 %v115
    %v345 = vunpack.c.h.b16 %v115
    %v346 = vunpack.c.l.b16 %v116
    %v347 = vunpack.c.h.b16 %v116
    %v348 = vunpack.c.l.b16 %v117
    %v349 = vunpack.c.h.b16 %v117
    %v350 = vunpack.c.l.b16 %v118
    %v351 = vunpack.c.h.b16 %v118
    %v352 = vunpack.c.l.b16 %v119
    %v353 = vunpack.c.h.b16 %v119
    %v354 = vunpack.c.l.b16 %v120
    %v355 = vunpack.c.h.b16 %v120
    %v356 = vunpack.c.l.b16 %v121
    %v357 = vunpack.c.h.b16 %v121
    %v358 = vunpack.c.l.b16 %v122
    %v359 = vunpack.c.h.b16 %v122
    %v360 = vunpack.c.l.b16 %v123
    %v361 = vunpack.c.h.b16 %v123
    %v362 = vunpack.c.l.b16 %v124
    %v363 = vunpack.c.h.b16 %v124
    %v364 = vunpack.c.l.b16 %v125
    %v365 = vunpack.c.h.b16 %v125
    %v366 = vunpack.c.l.b16 %v126
    %v367 = vunpack.c.h.b16 %v126
    %v368 = vunpack.c.l.b16 %v127
    %v369 = vunpack.c.h.b16 %v127
    %v370 = vunpack.c.l.b16 %v128
    %v371 = vunpack.c.h.b16 %v128
    %v372 = vunpack.c.l.b16 %v129
    %v373 = vunpack.c.h.b16 %v129
    %v374 = vunpack.c.l.b16 %v130
    %v375 = vunpack.c.h.b16 %v130
    %v376 = vunpack.c.l.b16 %v131
    %v377 = vunpack.c.h.b16 %v131
    %v378 = vunpack.c.l.b16 %v132
    %v379 = vunpack.c.h.b16 %v132
    %v380 = vunpack.c.l.b16 %v133
    %v381 = vunpack.c.h.b16 %v133
    %v382 = vunpack.c.l.b16 %v134
    %v383 = vunpack.c.h.b16 %v134
    %v384 = vunpack.c.l.b16 %v135
    %v385 = vunpack.c.h.b16 %v135
    %v386 = vunpack.c.l.b16 %v136
    %v387 = vunpack.c.h.b16 %v136
    %v388 = vunpack.c.l.b16 %v137
    %v389 = vunpack.c.h.b16 %v137
    %v390 = vunpack.c.l.b16 %v138
    %v391 = vunpack.c.h.b16 %v138
    %v392 = vunpack.c.l.b16 %v139
    %v393 = vunpack.c.h.b16 %v139
    %v394 = vunpack.c.l.b16 %v140
    %v395 = vunpack.c.h.b16 %v140
    %v396 = vunpack.c.l.b16 %v141
    %v397 = vunpack.c.h.b16 %v141
    %v398 = vunpack.c.l.b16 %v142
    %v399 = vunpack.c.h.b16 %v142
    %v400 = vunpack.c.l.b16 %v143
    %v401 = vunpack.c.h.b16 %v143
    %v402 = vunpack.c.l.b16 %v144
    %v403 = vunpack.c.h.b16 %v144
    %v404 = vunpack.c.l.b16 %v145
    %v405 = vunpack.c.h.b16 %v145
    %v406 = vpack.c.b16 %v346, %v342
    %v407 = vpack.c.b16 %v347, %v343
    %v408 = vpack.c.b16 %v348, %v344
    %v409 = vpack.c.b16 %v349, %v345
    %v410 = vpack.c.b16 %v354, %v350
    %v411 = vpack.c.b16 %v355, %v351
    %v412 = vpack.c.b16 %v356, %v352
    %v413 = vpack.c.b16 %v357, %v353
    %v414 = vpack.c.b16 %v362, %v358
    %v415 = vpack.c.b16 %v363, %v359
    %v416 = vpack.c.b16 %v364, %v360
    %v417 = vpack.c.b16 %v365, %v361
    %v418 = vpack.c.b16 %v370, %v366
    %v419 = vpack.c.b16 %v371, %v367
    %v420 = vpack.c.b16 %v372, %v368
    %v421 = vpack.c.b16 %v373, %v369
    %v422 = vpack.c.b16 %v378, %v374
    %v423 = vpack.c.b16 %v379, %v375
    %v424 = vpack.c.b16 %v380, %v376
    %v425 = vpack.c.b16 %v381, %v377
    %v426 = vpack.c.b16 %v386, %v382
    %v427 = vpack.c.b16 %v387, %v383
    %v428 = vpack.c.b16 %v388, %v384
    %v429 = vpack.c.b16 %v389, %v385
    %v430 = vpack.c.b16 %v394, %v390
    %v431 = vpack.c.b16 %v395, %v391
    %v432 = vpack.c.b16 %v396, %v392
    %v433 = vpack.c.b16 %v397, %v393
    %v434 = vpack.c.b16 %v402, %v398
    %v435 = vpack.c.b16 %v403, %v399
    %v436 = vpack.c.b16 %v404, %v400
    %v437 = vpack.c.b16 %v405, %v401
    %470 = vmatpush.bf16.xpose.msra.mxu0 %v434
    %471 = vmatpush.bf16.xpose.msra.mxu0 %v430
    %472 = vmatpush.bf16.xpose.msra.mxu0 %v426
    %473 = vmatpush.bf16.xpose.msra.mxu0 %v422
    %474 = vmatpush.bf16.xpose.msra.mxu0 %v418
    %475 = vmatpush.bf16.xpose.msra.mxu0 %v414
    %476 = vmatpush.bf16.xpose.msra.mxu0 %v410
    %477 = vmatpush.bf16.xpose.msra.mxu0 %v406
    %478 = vmatmul.bf16.gmra.mxu0 %v246
    %v479 = vpop.f32.mrf.mxu0
    %v480 = vadd.f32 %v148, %v479
    %v481 = vpop.f32.mrf.mxu0
    %v482 = vadd.f32 %v148, %v481
    %483 = vmatmul.bf16.gmra.mxu0 %v250
    %v484 = vpop.f32.mrf.mxu0
    %v485 = vadd.f32 %v148, %v484
    %v486 = vpop.f32.mrf.mxu0
    %v487 = vadd.f32 %v148, %v486
    %488 = vmatmul.bf16.gmra.mxu0 %v254
    %v489 = vpop.f32.mrf.mxu0
    %v490 = vadd.f32 %v148, %v489
    %v491 = vpop.f32.mrf.mxu0
    %v492 = vadd.f32 %v148, %v491
    %493 = vmatmul.bf16.gmra.mxu0 %v258
    %v494 = vpop.f32.mrf.mxu0
    %v495 = vadd.f32 %v148, %v494
    %v496 = vpop.f32.mrf.mxu0
    %v497 = vadd.f32 %v148, %v496
    %498 = vmatmul.bf16.gmra.mxu0 %v262
    %v499 = vpop.f32.mrf.mxu0
    %v500 = vadd.f32 %v148, %v499
    %v501 = vpop.f32.mrf.mxu0
    %v502 = vadd.f32 %v148, %v501
    %503 = vmatmul.bf16.gmra.mxu0 %v266
    %v504 = vpop.f32.mrf.mxu0
    %v505 = vadd.f32 %v148, %v504
    %v506 = vpop.f32.mrf.mxu0
    %v507 = vadd.f32 %v148, %v506
    %508 = vmatmul.bf16.gmra.mxu0 %v270
    %v509 = vpop.f32.mrf.mxu0
    %v510 = vadd.f32 %v148, %v509
    %v511 = vpop.f32.mrf.mxu0
    %v512 = vadd.f32 %v148, %v511
    %513 = vmatmul.bf16.gmra.mxu0 %v274
    %v514 = vpop.f32.mrf.mxu0
    %v515 = vadd.f32 %v148, %v514
    %v516 = vpop.f32.mrf.mxu0
    %v517 = vadd.f32 %v148, %v516
    %518 = vdwg.mxu0
    %519 = vmatpush.bf16.xpose.msra.mxu0 %v435
    %520 = vmatpush.bf16.xpose.msra.mxu0 %v431
    %521 = vmatpush.bf16.xpose.msra.mxu0 %v427
    %522 = vmatpush.bf16.xpose.msra.mxu0 %v423
    %523 = vmatpush.bf16.xpose.msra.mxu0 %v419
    %524 = vmatpush.bf16.xpose.msra.mxu0 %v415
    %525 = vmatpush.bf16.xpose.msra.mxu0 %v411
    %526 = vmatpush.bf16.xpose.msra.mxu0 %v407
    %527 = vmatmul.bf16.gmra.mxu0 %v247
    %v528 = vpop.f32.mrf.mxu0
    %v529 = vadd.f32 %v480, %v528
    %v530 = vpop.f32.mrf.mxu0
    %v531 = vadd.f32 %v482, %v530
    %532 = vmatmul.bf16.gmra.mxu0 %v251
    %v533 = vpop.f32.mrf.mxu0
    %v534 = vadd.f32 %v485, %v533
    %v535 = vpop.f32.mrf.mxu0
    %v536 = vadd.f32 %v487, %v535
    %537 = vmatmul.bf16.gmra.mxu0 %v255
    %v538 = vpop.f32.mrf.mxu0
    %v539 = vadd.f32 %v490, %v538
    %v540 = vpop.f32.mrf.mxu0
    %v541 = vadd.f32 %v492, %v540
    %542 = vmatmul.bf16.gmra.mxu0 %v259
    %v543 = vpop.f32.mrf.mxu0
    %v544 = vadd.f32 %v495, %v543
    %v545 = vpop.f32.mrf.mxu0
    %v546 = vadd.f32 %v497, %v545
    %547 = vmatmul.bf16.gmra.mxu0 %v263
    %v548 = vpop.f32.mrf.mxu0
    %v549 = vadd.f32 %v500, %v548
    %v550 = vpop.f32.mrf.mxu0
    %v551 = vadd.f32 %v502, %v550
    %552 = vmatmul.bf16.gmra.mxu0 %v267
    %v553 = vpop.f32.mrf.mxu0
    %v554 = vadd.f32 %v505, %v553
    %v555 = vpop.f32.mrf.mxu0
    %v556 = vadd.f32 %v507, %v555
    %557 = vmatmul.bf16.gmra.mxu0 %v271
    %v558 = vpop.f32.mrf.mxu0
    %v559 = vadd.f32 %v510, %v558
    %v560 = vpop.f32.mrf.mxu0
    %v561 = vadd.f32 %v512, %v560
    %562 = vmatmul.bf16.gmra.mxu0 %v275
    %v563 = vpop.f32.mrf.mxu0
    %v564 = vadd.f32 %v515, %v563
    %v565 = vpop.f32.mrf.mxu0
    %v566 = vadd.f32 %v517, %v565
    %567 = vdwg.mxu0
    %568 = vmatpush.bf16.xpose.msra.mxu0 %v436
    %569 = vmatpush.bf16.xpose.msra.mxu0 %v432
    %570 = vmatpush.bf16.xpose.msra.mxu0 %v428
    %571 = vmatpush.bf16.xpose.msra.mxu0 %v424
    %572 = vmatpush.bf16.xpose.msra.mxu0 %v420
    %573 = vmatpush.bf16.xpose.msra.mxu0 %v416
    %574 = vmatpush.bf16.xpose.msra.mxu0 %v412
    %575 = vmatpush.bf16.xpose.msra.mxu0 %v408
    %576 = vmatmul.bf16.gmra.mxu0 %v248
    %v577 = vpop.f32.mrf.mxu0
    %v578 = vadd.f32 %v529, %v577
    %v579 = vpop.f32.mrf.mxu0
    %v580 = vadd.f32 %v531, %v579
    %581 = vmatmul.bf16.gmra.mxu0 %v252
    %v582 = vpop.f32.mrf.mxu0
    %v583 = vadd.f32 %v534, %v582
    %v584 = vpop.f32.mrf.mxu0
    %v585 = vadd.f32 %v536, %v584
    %586 = vmatmul.bf16.gmra.mxu0 %v256
    %v587 = vpop.f32.mrf.mxu0
    %v588 = vadd.f32 %v539, %v587
    %v589 = vpop.f32.mrf.mxu0
    %v590 = vadd.f32 %v541, %v589
    %591 = vmatmul.bf16.gmra.mxu0 %v260
    %v592 = vpop.f32.mrf.mxu0
    %v593 = vadd.f32 %v544, %v592
    %v594 = vpop.f32.mrf.mxu0
    %v595 = vadd.f32 %v546, %v594
    %596 = vmatmul.bf16.gmra.mxu0 %v264
    %v597 = vpop.f32.mrf.mxu0
    %v598 = vadd.f32 %v549, %v597
    %v599 = vpop.f32.mrf.mxu0
    %v600 = vadd.f32 %v551, %v599
    %601 = vmatmul.bf16.gmra.mxu0 %v268
    %v602 = vpop.f32.mrf.mxu0
    %v603 = vadd.f32 %v554, %v602
    %v604 = vpop.f32.mrf.mxu0
    %v605 = vadd.f32 %v556, %v604
    %606 = vmatmul.bf16.gmra.mxu0 %v272
    %v607 = vpop.f32.mrf.mxu0
    %v608 = vadd.f32 %v559, %v607
    %v609 = vpop.f32.mrf.mxu0
    %v610 = vadd.f32 %v561, %v609
    %611 = vmatmul.bf16.gmra.mxu0 %v276
    %v612 = vpop.f32.mrf.mxu0
    %v613 = vadd.f32 %v564, %v612
    %v614 = vpop.f32.mrf.mxu0
    %v615 = vadd.f32 %v566, %v614
    %616 = vdwg.mxu0
    %617 = vmatpush.bf16.xpose.msra.mxu0 %v437
    %618 = vmatpush.bf16.xpose.msra.mxu0 %v433
    %619 = vmatpush.bf16.xpose.msra.mxu0 %v429
    %620 = vmatpush.bf16.xpose.msra.mxu0 %v425
    %621 = vmatpush.bf16.xpose.msra.mxu0 %v421
    %622 = vmatpush.bf16.xpose.msra.mxu0 %v417
    %623 = vmatpush.bf16.xpose.msra.mxu0 %v413
    %624 = vmatpush.bf16.xpose.msra.mxu0 %v409
    %625 = vmatmul.bf16.gmra.mxu0 %v249
    %v626 = vpop.f32.mrf.mxu0
    %v627 = vadd.f32 %v578, %v626
    %v628 = vpop.f32.mrf.mxu0
    %v629 = vadd.f32 %v580, %v628
    %630 = vmatmul.bf16.gmra.mxu0 %v253
    %v631 = vpop.f32.mrf.mxu0
    %v632 = vadd.f32 %v583, %v631
    %v633 = vpop.f32.mrf.mxu0
    %v634 = vadd.f32 %v585, %v633
    %635 = vmatmul.bf16.gmra.mxu0 %v257
    %v636 = vpop.f32.mrf.mxu0
    %v637 = vadd.f32 %v588, %v636
    %v638 = vpop.f32.mrf.mxu0
    %v639 = vadd.f32 %v590, %v638
    %640 = vmatmul.bf16.gmra.mxu0 %v261
    %v641 = vpop.f32.mrf.mxu0
    %v642 = vadd.f32 %v593, %v641
    %v643 = vpop.f32.mrf.mxu0
    %v644 = vadd.f32 %v595, %v643
    %645 = vmatmul.bf16.gmra.mxu0 %v265
    %v646 = vpop.f32.mrf.mxu0
    %v647 = vadd.f32 %v598, %v646
    %v648 = vpop.f32.mrf.mxu0
    %v649 = vadd.f32 %v600, %v648
    %650 = vmatmul.bf16.gmra.mxu0 %v269
    %v651 = vpop.f32.mrf.mxu0
    %v652 = vadd.f32 %v603, %v651
    %v653 = vpop.f32.mrf.mxu0
    %v654 = vadd.f32 %v605, %v653
    %655 = vmatmul.bf16.gmra.mxu0 %v273
    %v656 = vpop.f32.mrf.mxu0
    %v657 = vadd.f32 %v608, %v656
    %v658 = vpop.f32.mrf.mxu0
    %v659 = vadd.f32 %v610, %v658
    %660 = vmatmul.bf16.gmra.mxu0 %v277
    %v661 = vpop.f32.mrf.mxu0
    %v662 = vadd.f32 %v613, %v661
    %v663 = vpop.f32.mrf.mxu0
    %v664 = vadd.f32 %v615, %v663
    %665 = vdwg.mxu0
    %v666 = vmax.f32 %v627, 0.0
    %v667 = vmax.f32 %v629, 0.0
    %v668 = vmax.f32 %v632, 0.0
    %v669 = vmax.f32 %v634, 0.0
    %v670 = vmax.f32 %v637, 0.0
    %v671 = vmax.f32 %v639, 0.0
    %v672 = vmax.f32 %v642, 0.0
    %v673 = vmax.f32 %v644, 0.0
    %v674 = vmax.f32 %v647, 0.0
    %v675 = vmax.f32 %v649, 0.0
    %v676 = vmax.f32 %v652, 0.0
    %v677 = vmax.f32 %v654, 0.0
    %v678 = vmax.f32 %v657, 0.0
    %v679 = vmax.f32 %v659, 0.0
    %v680 = vmax.f32 %v662, 0.0
    %v681 = vmax.f32 %v664, 0.0
    %v682 = vpack.c.bf16 %v667, %v666
    %v683 = vpack.c.bf16 %v669, %v668
    %v684 = vpack.c.bf16 %v671, %v670
    %v685 = vpack.c.bf16 %v673, %v672
    %v686 = vpack.c.bf16 %v675, %v674
    %v687 = vpack.c.bf16 %v677, %v676
    %v688 = vpack.c.bf16 %v679, %v678
    %v689 = vpack.c.bf16 %v681, %v680
    %v690 = vld [vmem:[#allocation7] sm:$0xf]
    %v691 = vld [vmem:[#allocation7 + $0x4] sm:$0xf]
    %v692 = vld [vmem:[#allocation7 + $0x8] sm:$0xf]
    %v693 = vld [vmem:[#allocation7 + $0xc] sm:$0xf]
    %v694 = vld [vmem:[#allocation7 + $0x10] sm:$0xf]
    %v695 = vld [vmem:[#allocation7 + $0x14] sm:$0xf]
    %v696 = vld [vmem:[#allocation7 + $0x18] sm:$0xf]
    %v697 = vld [vmem:[#allocation7 + $0x1c] sm:$0xf]
    %v698 = vld [vmem:[#allocation7 + $0x20] sm:$0xf]
    %v699 = vld [vmem:[#allocation7 + $0x24] sm:$0xf]
    %v700 = vld [vmem:[#allocation7 + $0x28] sm:$0xf]
    %v701 = vld [vmem:[#allocation7 + $0x2c] sm:$0xf]
    %v702 = vld [vmem:[#allocation7 + $0x30] sm:$0xf]
    %v703 = vld [vmem:[#allocation7 + $0x34] sm:$0xf]
    %v704 = vld [vmem:[#allocation7 + $0x38] sm:$0xf]
    %v705 = vld [vmem:[#allocation7 + $0x3c] sm:$0xf]
    %v706 = vld [vmem:[#allocation7 + $0x40] sm:$0xf]
    %v707 = vld [vmem:[#allocation7 + $0x44] sm:$0xf]
    %v708 = vld [vmem:[#allocation7 + $0x48] sm:$0xf]
    %v709 = vld [vmem:[#allocation7 + $0x4c] sm:$0xf]
    %v710 = vld [vmem:[#allocation7 + $0x50] sm:$0xf]
    %v711 = vld [vmem:[#allocation7 + $0x54] sm:$0xf]
    %v712 = vld [vmem:[#allocation7 + $0x58] sm:$0xf]
    %v713 = vld [vmem:[#allocation7 + $0x5c] sm:$0xf]
    %v714 = vld [vmem:[#allocation7 + $0x60] sm:$0xf]
    %v715 = vld [vmem:[#allocation7 + $0x64] sm:$0xf]
    %v716 = vld [vmem:[#allocation7 + $0x68] sm:$0xf]
    %v717 = vld [vmem:[#allocation7 + $0x6c] sm:$0xf]
    %v718 = vld [vmem:[#allocation7 + $0x70] sm:$0xf]
    %v719 = vld [vmem:[#allocation7 + $0x74] sm:$0xf]
    %v720 = vld [vmem:[#allocation7 + $0x78] sm:$0xf]
    %v721 = vld [vmem:[#allocation7 + $0x7c] sm:$0xf]
    %v722 = vld [vmem:[#allocation7 + $0x80] sm:$0xf]
    %v723 = vld [vmem:[#allocation7 + $0x84] sm:$0xf]
    %v724 = vld [vmem:[#allocation7 + $0x88] sm:$0xf]
    %v725 = vld [vmem:[#allocation7 + $0x8c] sm:$0xf]
    %v726 = vld [vmem:[#allocation7 + $0x90] sm:$0xf]
    %v727 = vld [vmem:[#allocation7 + $0x94] sm:$0xf]
    %v728 = vld [vmem:[#allocation7 + $0x98] sm:$0xf]
    %v729 = vld [vmem:[#allocation7 + $0x9c] sm:$0xf]
    %v730 = vld [vmem:[#allocation7 + $0xa0] sm:$0xf]
    %v731 = vld [vmem:[#allocation7 + $0xa4] sm:$0xf]
    %v732 = vld [vmem:[#allocation7 + $0xa8] sm:$0xf]
    %v733 = vld [vmem:[#allocation7 + $0xac] sm:$0xf]
    %v734 = vld [vmem:[#allocation7 + $0xb0] sm:$0xf]
    %v735 = vld [vmem:[#allocation7 + $0xb4] sm:$0xf]
    %v736 = vld [vmem:[#allocation7 + $0xb8] sm:$0xf]
    %v737 = vld [vmem:[#allocation7 + $0xbc] sm:$0xf]
    %v738 = vld [vmem:[#allocation7 + $0xc0] sm:$0xf]
    %v739 = vld [vmem:[#allocation7 + $0xc4] sm:$0xf]
    %v740 = vld [vmem:[#allocation7 + $0xc8] sm:$0xf]
    %v741 = vld [vmem:[#allocation7 + $0xcc] sm:$0xf]
    %v742 = vld [vmem:[#allocation7 + $0xd0] sm:$0xf]
    %v743 = vld [vmem:[#allocation7 + $0xd4] sm:$0xf]
    %v744 = vld [vmem:[#allocation7 + $0xd8] sm:$0xf]
    %v745 = vld [vmem:[#allocation7 + $0xdc] sm:$0xf]
    %v746 = vld [vmem:[#allocation7 + $0xe0] sm:$0xf]
    %v747 = vld [vmem:[#allocation7 + $0xe4] sm:$0xf]
    %v748 = vld [vmem:[#allocation7 + $0xe8] sm:$0xf]
    %v749 = vld [vmem:[#allocation7 + $0xec] sm:$0xf]
    %v750 = vld [vmem:[#allocation7 + $0xf0] sm:$0xf]
    %v751 = vld [vmem:[#allocation7 + $0xf4] sm:$0xf]
    %v752 = vld [vmem:[#allocation7 + $0xf8] sm:$0xf]
    %v753 = vld [vmem:[#allocation7 + $0xfc] sm:$0xf]
    %v754 = vld [vmem:[#allocation8] sm:$0xf]
    %v756 = vperm.slane %v754, 0
    %v757 = vperm.slane %v754, 1
    %v758 = vperm.slane %v754, 2
    %v759 = vperm.slane %v754, 3
    %v828 = vunpack.c.l.b16 %v690
    %v829 = vunpack.c.l.b16 %v691
    %v830 = vunpack.c.l.b16 %v692
    %v831 = vunpack.c.l.b16 %v693
    %v832 = vunpack.c.l.b16 %v694
    %v833 = vunpack.c.l.b16 %v695
    %v834 = vunpack.c.l.b16 %v696
    %v835 = vunpack.c.l.b16 %v697
    %v836 = vunpack.c.l.b16 %v698
    %v837 = vunpack.c.l.b16 %v699
    %v838 = vunpack.c.l.b16 %v700
    %v839 = vunpack.c.l.b16 %v701
    %v840 = vunpack.c.l.b16 %v702
    %v841 = vunpack.c.l.b16 %v703
    %v842 = vunpack.c.l.b16 %v704
    %v843 = vunpack.c.l.b16 %v705
    %v844 = vunpack.c.l.b16 %v706
    %v845 = vunpack.c.l.b16 %v707
    %v846 = vunpack.c.l.b16 %v708
    %v847 = vunpack.c.l.b16 %v709
    %v848 = vunpack.c.l.b16 %v710
    %v849 = vunpack.c.l.b16 %v711
    %v850 = vunpack.c.l.b16 %v712
    %v851 = vunpack.c.l.b16 %v713
    %v852 = vunpack.c.l.b16 %v714
    %v853 = vunpack.c.l.b16 %v715
    %v854 = vunpack.c.l.b16 %v716
    %v855 = vunpack.c.l.b16 %v717
    %v856 = vunpack.c.l.b16 %v718
    %v857 = vunpack.c.l.b16 %v719
    %v858 = vunpack.c.l.b16 %v720
    %v859 = vunpack.c.l.b16 %v721
    %v860 = vunpack.c.l.b16 %v722
    %v861 = vunpack.c.l.b16 %v723
    %v862 = vunpack.c.l.b16 %v724
    %v863 = vunpack.c.l.b16 %v725
    %v864 = vunpack.c.l.b16 %v726
    %v865 = vunpack.c.l.b16 %v727
    %v866 = vunpack.c.l.b16 %v728
    %v867 = vunpack.c.l.b16 %v729
    %v868 = vunpack.c.l.b16 %v730
    %v869 = vunpack.c.l.b16 %v731
    %v870 = vunpack.c.l.b16 %v732
    %v871 = vunpack.c.l.b16 %v733
    %v872 = vunpack.c.l.b16 %v734
    %v873 = vunpack.c.l.b16 %v735
    %v874 = vunpack.c.l.b16 %v736
    %v875 = vunpack.c.l.b16 %v737
    %v876 = vunpack.c.l.b16 %v738
    %v877 = vunpack.c.l.b16 %v739
    %v878 = vunpack.c.l.b16 %v740
    %v879 = vunpack.c.l.b16 %v741
    %v880 = vunpack.c.l.b16 %v742
    %v881 = vunpack.c.l.b16 %v743
    %v882 = vunpack.c.l.b16 %v744
    %v883 = vunpack.c.l.b16 %v745
    %v884 = vunpack.c.l.b16 %v746
    %v885 = vunpack.c.l.b16 %v747
    %v886 = vunpack.c.l.b16 %v748
    %v887 = vunpack.c.l.b16 %v749
    %v888 = vunpack.c.l.b16 %v750
    %v889 = vunpack.c.l.b16 %v751
    %v890 = vunpack.c.l.b16 %v752
    %v891 = vunpack.c.l.b16 %v753
    %v892 = vpack.c.b16 %v829, %v828
    %v893 = vpack.c.b16 %v831, %v830
    %v894 = vpack.c.b16 %v833, %v832
    %v895 = vpack.c.b16 %v835, %v834
    %v896 = vpack.c.b16 %v837, %v836
    %v897 = vpack.c.b16 %v839, %v838
    %v898 = vpack.c.b16 %v841, %v840
    %v899 = vpack.c.b16 %v843, %v842
    %v900 = vpack.c.b16 %v845, %v844
    %v901 = vpack.c.b16 %v847, %v846
    %v902 = vpack.c.b16 %v849, %v848
    %v903 = vpack.c.b16 %v851, %v850
    %v904 = vpack.c.b16 %v853, %v852
    %v905 = vpack.c.b16 %v855, %v854
    %v906 = vpack.c.b16 %v857, %v856
    %v907 = vpack.c.b16 %v859, %v858
    %v908 = vpack.c.b16 %v861, %v860
    %v909 = vpack.c.b16 %v863, %v862
    %v910 = vpack.c.b16 %v865, %v864
    %v911 = vpack.c.b16 %v867, %v866
    %v912 = vpack.c.b16 %v869, %v868
    %v913 = vpack.c.b16 %v871, %v870
    %v914 = vpack.c.b16 %v873, %v872
    %v915 = vpack.c.b16 %v875, %v874
    %v916 = vpack.c.b16 %v877, %v876
    %v917 = vpack.c.b16 %v879, %v878
    %v918 = vpack.c.b16 %v881, %v880
    %v919 = vpack.c.b16 %v883, %v882
    %v920 = vpack.c.b16 %v885, %v884
    %v921 = vpack.c.b16 %v887, %v886
    %v922 = vpack.c.b16 %v889, %v888
    %v923 = vpack.c.b16 %v891, %v890
    %956 = vmatpush.bf16.xpose.msra.mxu0 %v899
    %957 = vmatpush.bf16.xpose.msra.mxu0 %v898
    %958 = vmatpush.bf16.xpose.msra.mxu0 %v897
    %959 = vmatpush.bf16.xpose.msra.mxu0 %v896
    %960 = vmatpush.bf16.xpose.msra.mxu0 %v895
    %961 = vmatpush.bf16.xpose.msra.mxu0 %v894
    %962 = vmatpush.bf16.xpose.msra.mxu0 %v893
    %963 = vmatpush.bf16.xpose.msra.mxu0 %v892
    %964 = vmatmul.bf16.gmra.mxu0 %v682
    %v965 = vpop.f32.mrf.mxu0
    %v966 = vadd.f32 %v756, %v965
    %v967 = vpop.f32.mrf.mxu0
    %v968 = vadd.f32 %v756, %v967
    %969 = vmatmul.bf16.gmra.mxu0 %v683
    %v970 = vpop.f32.mrf.mxu0
    %v971 = vadd.f32 %v756, %v970
    %v972 = vpop.f32.mrf.mxu0
    %v973 = vadd.f32 %v756, %v972
    %974 = vmatmul.bf16.gmra.mxu0 %v684
    %v975 = vpop.f32.mrf.mxu0
    %v976 = vadd.f32 %v756, %v975
    %v977 = vpop.f32.mrf.mxu0
    %v978 = vadd.f32 %v756, %v977
    %979 = vmatmul.bf16.gmra.mxu0 %v685
    %v980 = vpop.f32.mrf.mxu0
    %v981 = vadd.f32 %v756, %v980
    %v982 = vpop.f32.mrf.mxu0
    %v983 = vadd.f32 %v756, %v982
    %984 = vmatmul.bf16.gmra.mxu0 %v686
    %v985 = vpop.f32.mrf.mxu0
    %v986 = vadd.f32 %v756, %v985
    %v987 = vpop.f32.mrf.mxu0
    %v988 = vadd.f32 %v756, %v987
    %989 = vmatmul.bf16.gmra.mxu0 %v687
    %v990 = vpop.f32.mrf.mxu0
    %v991 = vadd.f32 %v756, %v990
    %v992 = vpop.f32.mrf.mxu0
    %v993 = vadd.f32 %v756, %v992
    %994 = vmatmul.bf16.gmra.mxu0 %v688
    %v995 = vpop.f32.mrf.mxu0
    %v996 = vadd.f32 %v756, %v995
    %v997 = vpop.f32.mrf.mxu0
    %v998 = vadd.f32 %v756, %v997
    %999 = vmatmul.bf16.gmra.mxu0 %v689
    %v1000 = vpop.f32.mrf.mxu0
    %v1001 = vadd.f32 %v756, %v1000
    %v1002 = vpop.f32.mrf.mxu0
    %v1003 = vadd.f32 %v756, %v1002
    %1004 = vdwg.mxu0
    %1005 = vmatpush.bf16.xpose.msra.mxu0 %v907
    %1006 = vmatpush.bf16.xpose.msra.mxu0 %v906
    %1007 = vmatpush.bf16.xpose.msra.mxu0 %v905
    %1008 = vmatpush.bf16.xpose.msra.mxu0 %v904
    %1009 = vmatpush.bf16.xpose.msra.mxu0 %v903
    %1010 = vmatpush.bf16.xpose.msra.mxu0 %v902
    %1011 = vmatpush.bf16.xpose.msra.mxu0 %v901
    %1012 = vmatpush.bf16.xpose.msra.mxu0 %v900
    %1013 = vmatmul.bf16.gmra.mxu0 %v682
    %v1014 = vpop.f32.mrf.mxu0
    %v1015 = vadd.f32 %v757, %v1014
    %v1016 = vpop.f32.mrf.mxu0
    %v1017 = vadd.f32 %v757, %v1016
    %1018 = vmatmul.bf16.gmra.mxu0 %v683
    %v1019 = vpop.f32.mrf.mxu0
    %v1020 = vadd.f32 %v757, %v1019
    %v1021 = vpop.f32.mrf.mxu0
    %v1022 = vadd.f32 %v757, %v1021
    %1023 = vmatmul.bf16.gmra.mxu0 %v684
    %v1024 = vpop.f32.mrf.mxu0
    %v1025 = vadd.f32 %v757, %v1024
    %v1026 = vpop.f32.mrf.mxu0
    %v1027 = vadd.f32 %v757, %v1026
    %1028 = vmatmul.bf16.gmra.mxu0 %v685
    %v1029 = vpop.f32.mrf.mxu0
    %v1030 = vadd.f32 %v757, %v1029
    %v1031 = vpop.f32.mrf.mxu0
    %v1032 = vadd.f32 %v757, %v1031
    %1033 = vmatmul.bf16.gmra.mxu0 %v686
    %v1034 = vpop.f32.mrf.mxu0
    %v1035 = vadd.f32 %v757, %v1034
    %v1036 = vpop.f32.mrf.mxu0
    %v1037 = vadd.f32 %v757, %v1036
    %1038 = vmatmul.bf16.gmra.mxu0 %v687
    %v1039 = vpop.f32.mrf.mxu0
    %v1040 = vadd.f32 %v757, %v1039
    %v1041 = vpop.f32.mrf.mxu0
    %v1042 = vadd.f32 %v757, %v1041
    %1043 = vmatmul.bf16.gmra.mxu0 %v688
    %v1044 = vpop.f32.mrf.mxu0
    %v1045 = vadd.f32 %v757, %v1044
    %v1046 = vpop.f32.mrf.mxu0
    %v1047 = vadd.f32 %v757, %v1046
    %1048 = vmatmul.bf16.gmra.mxu0 %v689
    %v1049 = vpop.f32.mrf.mxu0
    %v1050 = vadd.f32 %v757, %v1049
    %v1051 = vpop.f32.mrf.mxu0
    %v1052 = vadd.f32 %v757, %v1051
    %1053 = vdwg.mxu0
    %1054 = vmatpush.bf16.xpose.msra.mxu0 %v915
    %1055 = vmatpush.bf16.xpose.msra.mxu0 %v914
    %1056 = vmatpush.bf16.xpose.msra.mxu0 %v913
    %1057 = vmatpush.bf16.xpose.msra.mxu0 %v912
    %1058 = vmatpush.bf16.xpose.msra.mxu0 %v911
    %1059 = vmatpush.bf16.xpose.msra.mxu0 %v910
    %1060 = vmatpush.bf16.xpose.msra.mxu0 %v909
    %1061 = vmatpush.bf16.xpose.msra.mxu0 %v908
    %1062 = vmatmul.bf16.gmra.mxu0 %v682
    %v1063 = vpop.f32.mrf.mxu0
    %v1064 = vadd.f32 %v758, %v1063
    %v1065 = vpop.f32.mrf.mxu0
    %v1066 = vadd.f32 %v758, %v1065
    %1067 = vmatmul.bf16.gmra.mxu0 %v683
    %v1068 = vpop.f32.mrf.mxu0
    %v1069 = vadd.f32 %v758, %v1068
    %v1070 = vpop.f32.mrf.mxu0
    %v1071 = vadd.f32 %v758, %v1070
    %1072 = vmatmul.bf16.gmra.mxu0 %v684
    %v1073 = vpop.f32.mrf.mxu0
    %v1074 = vadd.f32 %v758, %v1073
    %v1075 = vpop.f32.mrf.mxu0
    %v1076 = vadd.f32 %v758, %v1075
    %1077 = vmatmul.bf16.gmra.mxu0 %v685
    %v1078 = vpop.f32.mrf.mxu0
    %v1079 = vadd.f32 %v758, %v1078
    %v1080 = vpop.f32.mrf.mxu0
    %v1081 = vadd.f32 %v758, %v1080
    %1082 = vmatmul.bf16.gmra.mxu0 %v686
    %v1083 = vpop.f32.mrf.mxu0
    %v1084 = vadd.f32 %v758, %v1083
    %v1085 = vpop.f32.mrf.mxu0
    %v1086 = vadd.f32 %v758, %v1085
    %1087 = vmatmul.bf16.gmra.mxu0 %v687
    %v1088 = vpop.f32.mrf.mxu0
    %v1089 = vadd.f32 %v758, %v1088
    %v1090 = vpop.f32.mrf.mxu0
    %v1091 = vadd.f32 %v758, %v1090
    %1092 = vmatmul.bf16.gmra.mxu0 %v688
    %v1093 = vpop.f32.mrf.mxu0
    %v1094 = vadd.f32 %v758, %v1093
    %v1095 = vpop.f32.mrf.mxu0
    %v1096 = vadd.f32 %v758, %v1095
    %1097 = vmatmul.bf16.gmra.mxu0 %v689
    %v1098 = vpop.f32.mrf.mxu0
    %v1099 = vadd.f32 %v758, %v1098
    %v1100 = vpop.f32.mrf.mxu0
    %v1101 = vadd.f32 %v758, %v1100
    %1102 = vdwg.mxu0
    %1103 = vmatpush.bf16.xpose.msra.mxu0 %v923
    %1104 = vmatpush.bf16.xpose.msra.mxu0 %v922
    %1105 = vmatpush.bf16.xpose.msra.mxu0 %v921
    %1106 = vmatpush.bf16.xpose.msra.mxu0 %v920
    %1107 = vmatpush.bf16.xpose.msra.mxu0 %v919
    %1108 = vmatpush.bf16.xpose.msra.mxu0 %v918
    %1109 = vmatpush.bf16.xpose.msra.mxu0 %v917
    %1110 = vmatpush.bf16.xpose.msra.mxu0 %v916
    %1111 = vmatmul.bf16.gmra.mxu0 %v682
    %v1112 = vpop.f32.mrf.mxu0
    %v1113 = vadd.f32 %v759, %v1112
    %v1114 = vpop.f32.mrf.mxu0
    %v1115 = vadd.f32 %v759, %v1114
    %1116 = vmatmul.bf16.gmra.mxu0 %v683
    %v1117 = vpop.f32.mrf.mxu0
    %v1118 = vadd.f32 %v759, %v1117
    %v1119 = vpop.f32.mrf.mxu0
    %v1120 = vadd.f32 %v759, %v1119
    %1121 = vmatmul.bf16.gmra.mxu0 %v684
    %v1122 = vpop.f32.mrf.mxu0
    %v1123 = vadd.f32 %v759, %v1122
    %v1124 = vpop.f32.mrf.mxu0
    %v1125 = vadd.f32 %v759, %v1124
    %1126 = vmatmul.bf16.gmra.mxu0 %v685
    %v1127 = vpop.f32.mrf.mxu0
    %v1128 = vadd.f32 %v759, %v1127
    %v1129 = vpop.f32.mrf.mxu0
    %v1130 = vadd.f32 %v759, %v1129
    %1131 = vmatmul.bf16.gmra.mxu0 %v686
    %v1132 = vpop.f32.mrf.mxu0
    %v1133 = vadd.f32 %v759, %v1132
    %v1134 = vpop.f32.mrf.mxu0
    %v1135 = vadd.f32 %v759, %v1134
    %1136 = vmatmul.bf16.gmra.mxu0 %v687
    %v1137 = vpop.f32.mrf.mxu0
    %v1138 = vadd.f32 %v759, %v1137
    %v1139 = vpop.f32.mrf.mxu0
    %v1140 = vadd.f32 %v759, %v1139
    %1141 = vmatmul.bf16.gmra.mxu0 %v688
    %v1142 = vpop.f32.mrf.mxu0
    %v1143 = vadd.f32 %v759, %v1142
    %v1144 = vpop.f32.mrf.mxu0
    %v1145 = vadd.f32 %v759, %v1144
    %1146 = vmatmul.bf16.gmra.mxu0 %v689
    %v1147 = vpop.f32.mrf.mxu0
    %v1148 = vadd.f32 %v759, %v1147
    %v1149 = vpop.f32.mrf.mxu0
    %v1150 = vadd.f32 %v759, %v1149
    %1151 = vdwg.mxu0
    %1152 = vst [vmem:[#allocation10] sm:$0xff] %v966
    %1153 = vst [vmem:[#allocation10 + $0x8] sm:$0xff] %v1015
    %1154 = vst [vmem:[#allocation10 + $0x10] sm:$0xff] %v1064
    %1155 = vst [vmem:[#allocation10 + $0x18] sm:$0xff] %v1113
    %1156 = vst [vmem:[#allocation10 + $0x20] sm:$0xff] %v968
    %1157 = vst [vmem:[#allocation10 + $0x28] sm:$0xff] %v1017
    %1158 = vst [vmem:[#allocation10 + $0x30] sm:$0xff] %v1066
    %1159 = vst [vmem:[#allocation10 + $0x38] sm:$0xff] %v1115
    %1160 = vst [vmem:[#allocation10 + $0x40] sm:$0xff] %v971
    %1161 = vst [vmem:[#allocation10 + $0x48] sm:$0xff] %v1020
    %1162 = vst [vmem:[#allocation10 + $0x50] sm:$0xff] %v1069
    %1163 = vst [vmem:[#allocation10 + $0x58] sm:$0xff] %v1118
    %1164 = vst [vmem:[#allocation10 + $0x60] sm:$0xff] %v973
    %1165 = vst [vmem:[#allocation10 + $0x68] sm:$0xff] %v1022
    %1166 = vst [vmem:[#allocation10 + $0x70] sm:$0xff] %v1071
    %1167 = vst [vmem:[#allocation10 + $0x78] sm:$0xff] %v1120
    %1168 = vst [vmem:[#allocation10 + $0x80] sm:$0xff] %v976
    %1169 = vst [vmem:[#allocation10 + $0x88] sm:$0xff] %v1025
    %1170 = vst [vmem:[#allocation10 + $0x90] sm:$0xff] %v1074
    %1171 = vst [vmem:[#allocation10 + $0x98] sm:$0xff] %v1123
    %1172 = vst [vmem:[#allocation10 + $0xa0] sm:$0xff] %v978
    %1173 = vst [vmem:[#allocation10 + $0xa8] sm:$0xff] %v1027
    %1174 = vst [vmem:[#allocation10 + $0xb0] sm:$0xff] %v1076
    %1175 = vst [vmem:[#allocation10 + $0xb8] sm:$0xff] %v1125
    %1176 = vst [vmem:[#allocation10 + $0xc0] sm:$0xff] %v981
    %1177 = vst [vmem:[#allocation10 + $0xc8] sm:$0xff] %v1030
    %1178 = vst [vmem:[#allocation10 + $0xd0] sm:$0xff] %v1079
    %1179 = vst [vmem:[#allocation10 + $0xd8] sm:$0xff] %v1128
    %1180 = vst [vmem:[#allocation10 + $0xe0] sm:$0xff] %v983
    %1181 = vst [vmem:[#allocation10 + $0xe8] sm:$0xff] %v1032
    %1182 = vst [vmem:[#allocation10 + $0xf0] sm:$0xff] %v1081
    %1183 = vst [vmem:[#allocation10 + $0xf8] sm:$0xff] %v1130
    %1184 = vst [vmem:[#allocation10 + $0x100] sm:$0xff] %v986
    %1185 = vst [vmem:[#allocation10 + $0x108] sm:$0xff] %v1035
    %1186 = vst [vmem:[#allocation10 + $0x110] sm:$0xff] %v1084
    %1187 = vst [vmem:[#allocation10 + $0x118] sm:$0xff] %v1133
    %1188 = vst [vmem:[#allocation10 + $0x120] sm:$0xff] %v988
    %1189 = vst [vmem:[#allocation10 + $0x128] sm:$0xff] %v1037
    %1190 = vst [vmem:[#allocation10 + $0x130] sm:$0xff] %v1086
    %1191 = vst [vmem:[#allocation10 + $0x138] sm:$0xff] %v1135
    %1192 = vst [vmem:[#allocation10 + $0x140] sm:$0xff] %v991
    %1193 = vst [vmem:[#allocation10 + $0x148] sm:$0xff] %v1040
    %1194 = vst [vmem:[#allocation10 + $0x150] sm:$0xff] %v1089
    %1195 = vst [vmem:[#allocation10 + $0x158] sm:$0xff] %v1138
    %1196 = vst [vmem:[#allocation10 + $0x160] sm:$0xff] %v993
    %1197 = vst [vmem:[#allocation10 + $0x168] sm:$0xff] %v1042
    %1198 = vst [vmem:[#allocation10 + $0x170] sm:$0xff] %v1091
    %1199 = vst [vmem:[#allocation10 + $0x178] sm:$0xff] %v1140
    %1200 = vst [vmem:[#allocation10 + $0x180] sm:$0xff] %v996
    %1201 = vst [vmem:[#allocation10 + $0x188] sm:$0xff] %v1045
    %1202 = vst [vmem:[#allocation10 + $0x190] sm:$0xff] %v1094
    %1203 = vst [vmem:[#allocation10 + $0x198] sm:$0xff] %v1143
    %1204 = vst [vmem:[#allocation10 + $0x1a0] sm:$0xff] %v998
    %1205 = vst [vmem:[#allocation10 + $0x1a8] sm:$0xff] %v1047
    %1206 = vst [vmem:[#allocation10 + $0x1b0] sm:$0xff] %v1096
    %1207 = vst [vmem:[#allocation10 + $0x1b8] sm:$0xff] %v1145
    %1208 = vst [vmem:[#allocation10 + $0x1c0] sm:$0xff] %v1001
    %1209 = vst [vmem:[#allocation10 + $0x1c8] sm:$0xff] %v1050
    %1210 = vst [vmem:[#allocation10 + $0x1d0] sm:$0xff] %v1099
    %1211 = vst [vmem:[#allocation10 + $0x1d8] sm:$0xff] %v1148
    %1212 = vst [vmem:[#allocation10 + $0x1e0] sm:$0xff] %v1003
    %1213 = vst [vmem:[#allocation10 + $0x1e8] sm:$0xff] %v1052
    %1214 = vst [vmem:[#allocation10 + $0x1f0] sm:$0xff] %v1101
    %1215 = vst [vmem:[#allocation10 + $0x1f8] sm:$0xff] %v1150
    // Predicated region
    $region38: #{tpu_custom_call.1} parent=1 // pred_check
      _
    $region39: #{tpu_custom_call.1} parent=1 // pred_check_branch
      %1217 = sbr.rel (0) target = $region41
    $region40: #{tpu_custom_call.1} parent=1 // pred_region
      %1219 = vsyncadd [#allocation4], 0
      %s1220 = sshll.u32 [#allocation10], 4
      %s1221 = int_to_ptr.vmem [resolvable:$true] %s1220
      %s1222 = sshll.u32 %s5, 4
      %s1223 = int_to_ptr.hbm [resolvable:$true] %s1222
      %1228 = dma.vmem_to_hbm [thread:$0]  %s1221, 8192, %s1223, [#allocation4], 512, 512, 32
    $region41: #{tpu_custom_call.1} parent=1 // pred_fallthru
      _
    // Predicated region
    $region42: #{tpu_custom_call.1} parent=1 // pred_check
      _
    $region43: #{tpu_custom_call.1} parent=1 // pred_check_branch
      %1230 = sbr.rel (0) target = $region45
    $region44: #{tpu_custom_call.1} parent=1 // pred_region
      %1232 = dma.done [#allocation4], 8192
    $region45: #{tpu_custom_call.1} parent=1 // pred_fallthru
      _
    %1233 = vsyncpa [#allocation3], 1
    %1234 = vsyncpa [#allocation6], 1
    %1235 = vsyncpa [#allocation9], 1
    %1236 = vsyncpa [#allocation4], 1

</llo_original>
